<compile_context>
chip_gen: v7x
topology: tpu7x:2x2x1
jax: 0.10.0
libtpu: 0.0.40
codegen_flags: <defaults>
</compile_context>

<pallas_src>
import functools

import jax
import jax.numpy as jnp
from jax import lax
from jax.experimental import pallas as pl
from jax.experimental.pallas import tpu as pltpu

_LANES = 128
_MAX_TILE_ROWS = 1024          # (1024, 128) f32 = 512 KiB per input per buffer


def _balanced_loss_kernel(x_ref, t_ref, o_ref,
                          pos_loss_acc, neg_loss_acc, pos_cnt_acc, neg_cnt_acc,
                          *, neg_weight, valid_rows, tile_rows, needs_mask):
    i = pl.program_id(0)

    @pl.when(i == 0)
    def _init():
        pos_loss_acc[...] = jnp.zeros_like(pos_loss_acc)
        neg_loss_acc[...] = jnp.zeros_like(neg_loss_acc)
        pos_cnt_acc[...] = jnp.zeros_like(pos_cnt_acc)
        neg_cnt_acc[...] = jnp.zeros_like(neg_cnt_acc)

    x = x_ref[...].astype(jnp.float32)        # (tile_rows, 128) logits
    t = t_ref[...].astype(jnp.float32)        # (tile_rows, 128) targets {0,1}; -1 pad

    if needs_mask:
        # The last grid block extends past the array: neutralize garbage rows so
        # they contribute nothing (and cannot inject NaN/Inf into the sums).
        row_ids = i * tile_rows + lax.broadcasted_iota(jnp.int32, x.shape, 0)
        valid = row_ids < valid_rows
        x = jnp.where(valid, x, 0.0)
        t = jnp.where(valid, t, -1.0)         # -1 is neither pos nor neg

    pos = (t == 1.0).astype(jnp.float32)
    neg = (t == 0.0).astype(jnp.float32)

    # numerically stable binary_cross_entropy_with_logits (2 EUP ops / element)
    per = jnp.maximum(x, 0.0) - x * t + jnp.log1p(jnp.exp(-jnp.abs(x)))

    # VPU-only accumulation; the cross-lane/sublane reductions happen once at the end.
    pos_loss_acc[...] += pos * per
    neg_loss_acc[...] += neg * per
    pos_cnt_acc[...] += pos
    neg_cnt_acc[...] += neg

    @pl.when(i == pl.num_programs(0) - 1)
    def _finalize():
        s_pos = jnp.sum(pos_loss_acc[...])
        s_neg = jnp.sum(neg_loss_acc[...])
        pos_num = jnp.sum(pos_cnt_acc[...])
        neg_num = jnp.sum(neg_cnt_acc[...])
        # weight.sum() == pos_num*(1/pos_num) + neg_num*(neg_weight/neg_num)
        #              == 1 + neg_weight, folded to a compile-time constant.
        inv_norm = 1.0 / (1.0 + neg_weight)
        o_ref[0, 0] = (s_pos / pos_num + neg_weight * (s_neg / neg_num)) * inv_norm


def balanced_loss(logits, target, neg_weight=1.0):
    """Pallas implementation of BalancedLoss.forward. Returns a scalar f32."""
    n = logits.size
    x = logits.reshape(-1)                    # free (bitcast) reshape
    t = target.reshape(-1)
    if not jnp.issubdtype(t.dtype, jnp.floating):
        t = t.astype(jnp.float32)

    # Only copies when the flat size isn't lane aligned (<= 127 pad elements);
    # pad targets are -1 -> zero contribution.
    pad = (-n) % _LANES
    if pad:
        x = jnp.pad(x, (0, pad))
        t = jnp.pad(t, (0, pad), constant_values=-1.0)
    rows = (n + pad) // _LANES
    x2 = x.reshape(rows, _LANES)
    t2 = t.reshape(rows, _LANES)

    # Small inputs: one block whose sublane dim equals the full array dim
    # (exempt from the /8 rule).  Large inputs: 1024-row tiles, ragged tail
    # masked in-kernel.
    tile_rows = rows if rows <= _MAX_TILE_ROWS else _MAX_TILE_ROWS
    num_blocks = (rows + tile_rows - 1) // tile_rows
    needs_mask = (rows % tile_rows) != 0

    kernel = functools.partial(
        _balanced_loss_kernel,
        neg_weight=float(neg_weight),
        valid_rows=rows,
        tile_rows=tile_rows,
        needs_mask=needs_mask,
    )

    bytes_accessed = rows * _LANES * (x2.dtype.itemsize + t2.dtype.itemsize) + 4
    out = pl.pallas_call(
        kernel,
        out_shape=jax.ShapeDtypeStruct((1, 1), jnp.float32),
        grid=(num_blocks,),
        in_specs=[
            pl.BlockSpec((tile_rows, _LANES), lambda i: (i, 0)),
            pl.BlockSpec((tile_rows, _LANES), lambda i: (i, 0)),
        ],
        out_specs=pl.BlockSpec((1, 1), lambda i: (0, 0),
                               memory_space=pltpu.MemorySpace.SMEM),
        scratch_shapes=[pltpu.VMEM((tile_rows, _LANES), jnp.float32)] * 4,
        compiler_params=pltpu.CompilerParams(
            dimension_semantics=("arbitrary",)),
        cost_estimate=pl.CostEstimate(flops=8 * n, transcendentals=2 * n,
                                      bytes_accessed=int(bytes_accessed)),
    )(x2, t2)
    return out[0, 0]


def _reference_balanced_loss(logits, target, neg_weight=1.0):
    # plain-JAX reference mirroring the PyTorch module
    x = logits.astype(jnp.float32)
    t = target.astype(jnp.float32)
    pos = (t == 1.0).astype(jnp.float32)
    neg = (t == 0.0).astype(jnp.float32)
    w = pos / jnp.sum(pos) + neg * (neg_weight / jnp.sum(neg))
    w = w / jnp.sum(w)
    per = jnp.maximum(x, 0.0) - x * t + jnp.log1p(jnp.exp(-jnp.abs(x)))
    return jnp.sum(w * per)


if __name__ == "__main__":
    key = jax.random.PRNGKey(0)
    k1, k2, k3, k4 = jax.random.split(key, 4)

    # SiamFC-style response map, NCHW
    B, C, H, W = 2, 4, 16, 16
    logits = jax.random.normal(k1, (B, C, H, W), dtype=jnp.float32)
    target = jax.random.bernoulli(k2, p=0.25, shape=(B, C, H, W)).astype(jnp.float32)

    loss = balanced_loss(logits, target, neg_weight=1.0)
    loss = jax.block_until_ready(loss)
    ref = _reference_balanced_loss(logits, target, neg_weight=1.0)
    assert jnp.allclose(loss, ref, rtol=1e-5, atol=1e-5), (loss, ref)

    # extra check: non-lane-aligned SiamFC size (15x15) exercises the pad path
    logits2 = jax.random.normal(k3, (2, 1, 15, 15), dtype=jnp.float32)
    target2 = jax.random.bernoulli(k4, p=0.2, shape=(2, 1, 15, 15)).astype(jnp.float32)
    loss2 = jax.block_until_ready(balanced_loss(logits2, target2, neg_weight=0.5))
    ref2 = _reference_balanced_loss(logits2, target2, neg_weight=0.5)
    assert jnp.allclose(loss2, ref2, rtol=1e-5, atol=1e-5), (loss2, ref2)

    print("KERNEL_OK")
</pallas_src>

<mosaic_0001>
module attributes {stable_mosaic.version = 11 : i64} {
  func.func @_balanced_loss_kernel(%arg0: i32, %arg1: memref<16x128xf32, #tpu.memory_space<vmem>>, %arg2: memref<16x128xf32, #tpu.memory_space<vmem>>, %arg3: memref<1x1xf32, #tpu.memory_space<smem>>, %arg4: memref<16x128xf32, #tpu.memory_space<vmem>>, %arg5: memref<16x128xf32, #tpu.memory_space<vmem>>, %arg6: memref<16x128xf32, #tpu.memory_space<vmem>>, %arg7: memref<16x128xf32, #tpu.memory_space<vmem>>) attributes {dimension_semantics = [#tpu.dimension_semantics<arbitrary>], iteration_bounds = array<i64: 1>, scalar_prefetch = 0 : i64, scratch_operands = 4 : i64, tpu.core_type = #tpu.core_type<tc>, window_params = [{transform_indices = @transform_0, window_bounds = array<i64: 16, 128>}, {transform_indices = @transform_1, window_bounds = array<i64: 16, 128>}, {transform_indices = @transform_2, window_bounds = array<i64: 1, 1>}]} {
    %c0_i32 = arith.constant 0 : i32
    %0 = arith.cmpi eq, %arg0, %c0_i32 : i32
    %1 = arith.extui %0 : i1 to i32
    %c0_i32_0 = arith.constant 0 : i32
    %2 = arith.cmpi ne, %1, %c0_i32_0 : i32
    scf.if %2 {
      %cst_25 = arith.constant 0.000000e+00 : f32
      %40 = vector.broadcast %cst_25 : f32 to vector<16x128xf32>
      %c0_26 = arith.constant 0 : index
      %c0_27 = arith.constant 0 : index
      %41 = vector.load %arg4[%c0_26, %c0_27] : memref<16x128xf32, #tpu.memory_space<vmem>>, vector<16x128xf32>
      tpu.vector_store %arg4[%c0_26, %c0_27], %40 {strides = array<i32>} : memref<16x128xf32, #tpu.memory_space<vmem>>, vector<16x128xf32>,
      %cst_28 = arith.constant 0.000000e+00 : f32
      %42 = vector.broadcast %cst_28 : f32 to vector<16x128xf32>
      %c0_29 = arith.constant 0 : index
      %c0_30 = arith.constant 0 : index
      %43 = vector.load %arg5[%c0_29, %c0_30] : memref<16x128xf32, #tpu.memory_space<vmem>>, vector<16x128xf32>
      tpu.vector_store %arg5[%c0_29, %c0_30], %42 {strides = array<i32>} : memref<16x128xf32, #tpu.memory_space<vmem>>, vector<16x128xf32>,
      %cst_31 = arith.constant 0.000000e+00 : f32
      %44 = vector.broadcast %cst_31 : f32 to vector<16x128xf32>
      %c0_32 = arith.constant 0 : index
      %c0_33 = arith.constant 0 : index
      %45 = vector.load %arg6[%c0_32, %c0_33] : memref<16x128xf32, #tpu.memory_space<vmem>>, vector<16x128xf32>
      tpu.vector_store %arg6[%c0_32, %c0_33], %44 {strides = array<i32>} : memref<16x128xf32, #tpu.memory_space<vmem>>, vector<16x128xf32>,
      %cst_34 = arith.constant 0.000000e+00 : f32
      %46 = vector.broadcast %cst_34 : f32 to vector<16x128xf32>
      %c0_35 = arith.constant 0 : index
      %c0_36 = arith.constant 0 : index
      %47 = vector.load %arg7[%c0_35, %c0_36] : memref<16x128xf32, #tpu.memory_space<vmem>>, vector<16x128xf32>
      tpu.vector_store %arg7[%c0_35, %c0_36], %46 {strides = array<i32>} : memref<16x128xf32, #tpu.memory_space<vmem>>, vector<16x128xf32>,
    } else {
    }
    %c0 = arith.constant 0 : index
    %c0_1 = arith.constant 0 : index
    %3 = vector.load %arg1[%c0, %c0_1] : memref<16x128xf32, #tpu.memory_space<vmem>>, vector<16x128xf32>
    %c0_2 = arith.constant 0 : index
    %c0_3 = arith.constant 0 : index
    %4 = vector.load %arg2[%c0_2, %c0_3] : memref<16x128xf32, #tpu.memory_space<vmem>>, vector<16x128xf32>
    %cst = arith.constant 1.000000e+00 : f32
    %5 = vector.broadcast %cst : f32 to vector<16x128xf32>
    %6 = arith.cmpf oeq, %4, %5 : vector<16x128xf32>
    %7 = arith.extui %6 : vector<16x128xi1> to vector<16x128xi32>
    %8 = arith.sitofp %7 : vector<16x128xi32> to vector<16x128xf32>
    %cst_4 = arith.constant 0.000000e+00 : f32
    %9 = vector.broadcast %cst_4 : f32 to vector<16x128xf32>
    %10 = arith.cmpf oeq, %4, %9 : vector<16x128xf32>
    %11 = arith.extui %10 : vector<16x128xi1> to vector<16x128xi32>
    %12 = arith.sitofp %11 : vector<16x128xi32> to vector<16x128xf32>
    %cst_5 = arith.constant 0.000000e+00 : f32
    %13 = vector.broadcast %cst_5 : f32 to vector<16x128xf32>
    %14 = arith.maximumf %3, %13 : vector<16x128xf32>
    %15 = arith.mulf %3, %4 : vector<16x128xf32>
    %16 = arith.subf %14, %15 : vector<16x128xf32>
    %17 = math.absf %3 : vector<16x128xf32>
    %cst_6 = arith.constant 0.000000e+00 : f32
    %18 = vector.broadcast %cst_6 : f32 to vector<16x128xf32>
    %19 = arith.subf %18, %17 : vector<16x128xf32>
    %20 = math.exp %19 : vector<16x128xf32>
    %21 = math.log1p %20 : vector<16x128xf32>
    %22 = arith.addf %16, %21 : vector<16x128xf32>
    %c0_7 = arith.constant 0 : index
    %c0_8 = arith.constant 0 : index
    %23 = vector.load %arg4[%c0_7, %c0_8] : memref<16x128xf32, #tpu.memory_space<vmem>>, vector<16x128xf32>
    %24 = arith.mulf %8, %22 : vector<16x128xf32>
    %25 = arith.addf %23, %24 : vector<16x128xf32>
    %c0_9 = arith.constant 0 : index
    %c0_10 = arith.constant 0 : index
    %26 = vector.load %arg4[%c0_9, %c0_10] : memref<16x128xf32, #tpu.memory_space<vmem>>, vector<16x128xf32>
    tpu.vector_store %arg4[%c0_9, %c0_10], %25 {strides = array<i32>} : memref<16x128xf32, #tpu.memory_space<vmem>>, vector<16x128xf32>,
    %c0_11 = arith.constant 0 : index
    %c0_12 = arith.constant 0 : index
    %27 = vector.load %arg5[%c0_11, %c0_12] : memref<16x128xf32, #tpu.memory_space<vmem>>, vector<16x128xf32>
    %28 = arith.mulf %12, %22 : vector<16x128xf32>
    %29 = arith.addf %27, %28 : vector<16x128xf32>
    %c0_13 = arith.constant 0 : index
    %c0_14 = arith.constant 0 : index
    %30 = vector.load %arg5[%c0_13, %c0_14] : memref<16x128xf32, #tpu.memory_space<vmem>>, vector<16x128xf32>
    tpu.vector_store %arg5[%c0_13, %c0_14], %29 {strides = array<i32>} : memref<16x128xf32, #tpu.memory_space<vmem>>, vector<16x128xf32>,
    %c0_15 = arith.constant 0 : index
    %c0_16 = arith.constant 0 : index
    %31 = vector.load %arg6[%c0_15, %c0_16] : memref<16x128xf32, #tpu.memory_space<vmem>>, vector<16x128xf32>
    %32 = arith.addf %31, %8 : vector<16x128xf32>
    %c0_17 = arith.constant 0 : index
    %c0_18 = arith.constant 0 : index
    %33 = vector.load %arg6[%c0_17, %c0_18] : memref<16x128xf32, #tpu.memory_space<vmem>>, vector<16x128xf32>
    tpu.vector_store %arg6[%c0_17, %c0_18], %32 {strides = array<i32>} : memref<16x128xf32, #tpu.memory_space<vmem>>, vector<16x128xf32>,
    %c0_19 = arith.constant 0 : index
    %c0_20 = arith.constant 0 : index
    %34 = vector.load %arg7[%c0_19, %c0_20] : memref<16x128xf32, #tpu.memory_space<vmem>>, vector<16x128xf32>
    %35 = arith.addf %34, %12 : vector<16x128xf32>
    %c0_21 = arith.constant 0 : index
    %c0_22 = arith.constant 0 : index
    %36 = vector.load %arg7[%c0_21, %c0_22] : memref<16x128xf32, #tpu.memory_space<vmem>>, vector<16x128xf32>
    tpu.vector_store %arg7[%c0_21, %c0_22], %35 {strides = array<i32>} : memref<16x128xf32, #tpu.memory_space<vmem>>, vector<16x128xf32>,
    %c0_i32_23 = arith.constant 0 : i32
    %37 = arith.cmpi eq, %arg0, %c0_i32_23 : i32
    %38 = arith.extui %37 : i1 to i32
    %c0_i32_24 = arith.constant 0 : i32
    %39 = arith.cmpi ne, %38, %c0_i32_24 : i32
    scf.if %39 {
      %c0_25 = arith.constant 0 : index
      %c0_26 = arith.constant 0 : index
      %40 = vector.load %arg4[%c0_25, %c0_26] : memref<16x128xf32, #tpu.memory_space<vmem>>, vector<16x128xf32>
      %41 = vector.shape_cast %40 : vector<16x128xf32> to vector<1x16x128xf32>
      %cst_27 = arith.constant dense<0.000000e+00> : vector<1xf32>
      %42 = vector.multi_reduction <add>, %41, %cst_27 [1, 2] : vector<1x16x128xf32> to vector<1xf32>
      %43 = vector.shape_cast %42 : vector<1xf32> to vector<1x1x1xf32>
      %44 = vector.extract %43[0, 0, 0] : f32 from vector<1x1x1xf32>
      %c0_28 = arith.constant 0 : index
      %c0_29 = arith.constant 0 : index
      %45 = vector.load %arg5[%c0_28, %c0_29] : memref<16x128xf32, #tpu.memory_space<vmem>>, vector<16x128xf32>
      %46 = vector.shape_cast %45 : vector<16x128xf32> to vector<1x16x128xf32>
      %cst_30 = arith.constant dense<0.000000e+00> : vector<1xf32>
      %47 = vector.multi_reduction <add>, %46, %cst_30 [1, 2] : vector<1x16x128xf32> to vector<1xf32>
      %48 = vector.shape_cast %47 : vector<1xf32> to vector<1x1x1xf32>
      %49 = vector.extract %48[0, 0, 0] : f32 from vector<1x1x1xf32>
      %c0_31 = arith.constant 0 : index
      %c0_32 = arith.constant 0 : index
      %50 = vector.load %arg6[%c0_31, %c0_32] : memref<16x128xf32, #tpu.memory_space<vmem>>, vector<16x128xf32>
      %51 = vector.shape_cast %50 : vector<16x128xf32> to vector<1x16x128xf32>
      %cst_33 = arith.constant dense<0.000000e+00> : vector<1xf32>
      %52 = vector.multi_reduction <add>, %51, %cst_33 [1, 2] : vector<1x16x128xf32> to vector<1xf32>
      %53 = vector.shape_cast %52 : vector<1xf32> to vector<1x1x1xf32>
      %54 = vector.extract %53[0, 0, 0] : f32 from vector<1x1x1xf32>
      %c0_34 = arith.constant 0 : index
      %c0_35 = arith.constant 0 : index
      %55 = vector.load %arg7[%c0_34, %c0_35] : memref<16x128xf32, #tpu.memory_space<vmem>>, vector<16x128xf32>
      %56 = vector.shape_cast %55 : vector<16x128xf32> to vector<1x16x128xf32>
      %cst_36 = arith.constant dense<0.000000e+00> : vector<1xf32>
      %57 = vector.multi_reduction <add>, %56, %cst_36 [1, 2] : vector<1x16x128xf32> to vector<1xf32>
      %58 = vector.shape_cast %57 : vector<1xf32> to vector<1x1x1xf32>
      %59 = vector.extract %58[0, 0, 0] : f32 from vector<1x1x1xf32>
      %60 = arith.divf %44, %54 : f32
      %61 = arith.divf %49, %59 : f32
      %cst_37 = arith.constant 1.000000e+00 : f32
      %62 = arith.mulf %cst_37, %61 : f32
      %63 = arith.addf %60, %62 : f32
      %cst_38 = arith.constant 5.000000e-01 : f32
      %64 = arith.mulf %63, %cst_38 : f32
      %c0_39 = arith.constant 0 : index
      %c0_40 = arith.constant 0 : index
      %65 = memref.load %arg3[%c0_39, %c0_40] : memref<1x1xf32, #tpu.memory_space<smem>>
      memref.store %64, %arg3[%c0_39, %c0_40] : memref<1x1xf32, #tpu.memory_space<smem>>
    } else {
    }
    return
  }
  func.func @transform_0(%arg0: i32) -> (i32, i32) {
    %c0_i32 = arith.constant 0 : i32
    %c0_i32_0 = arith.constant 0 : i32
    return %arg0, %c0_i32 : i32, i32
  }
  func.func @transform_1(%arg0: i32) -> (i32, i32) {
    %c0_i32 = arith.constant 0 : i32
    %c0_i32_0 = arith.constant 0 : i32
    return %arg0, %c0_i32 : i32, i32
  }
  func.func @transform_2(%arg0: i32) -> (i32, i32) {
    %c0_i32 = arith.constant 0 : i32
    %c0_i32_0 = arith.constant 0 : i32
    %c0_i32_1 = arith.constant 0 : i32
    return %c0_i32, %c0_i32_0 : i32, i32
  }
}

</mosaic_0001>

<llo_original>
// kernel: tpu_custom_call.1
$region0: #{tpu_custom_call.1}
  #allocation0 [shape = 'u32[]', space=smem, size = 0x4, offset = 0x4, fixed_abs, tag = 'smem constant byte address 0x4 - core index']
  #allocation1 [shape = 'u32[144,128]{1,0:T(1,128)}', space=vmem, size = 0x12000, scoped, tag = 'internal scratch']
  #allocation2 [shape = 'f32[16,128]{1,0:T(8,128)}', space=vmem, size = 0x2000, scoped, tag = 'scratch operand']
  #allocation3 [shape = 'f32[16,128]{1,0:T(8,128)}', space=vmem, size = 0x2000, scoped, tag = 'scratch operand']
  #allocation4 [shape = 'f32[16,128]{1,0:T(8,128)}', space=vmem, size = 0x2000, scoped, tag = 'scratch operand']
  #allocation5 [shape = 'f32[16,128]{1,0:T(8,128)}', space=vmem, size = 0x2000, scoped, tag = 'scratch operand']
  %s0 = inlined_call_operand.hbm [shape: f32[16,128], index: 0, kind: input, shape index: {}]
  %s1 = inlined_call_operand.hbm [shape: f32[16,128], index: 1, kind: input, shape index: {}]
  %s2 = inlined_call_operand.hbm [shape: f32[1,1], index: 2, kind: output, shape index: {}]
  %s3 = sld [smem:[#allocation0]]
  $region34: #{tpu_custom_call.1} parent=0
    _
  %s5 = ssub.s32 1, %s3
  %s6 = scalar_select 0, %s5, %s3
  $region1: #{tpu_custom_call.1} parent=0
    #allocation6 [shape = 'u8[8192]{0}', space=vmem, size = 0x2000, scoped, tag = 'input window, operand 0, single buffered']
    #allocation7 [shape = 's32[1]{0}', space=sflag, size = 0x4, scoped, tag = 'scoped memory for tpu_custom_call.1']
    #allocation8 [shape = 's32[1]{0}', space=sflag, size = 0x4, scoped, tag = 'scoped memory for tpu_custom_call.1']
    #allocation9 [shape = 'u8[8192]{0}', space=vmem, size = 0x2000, scoped, tag = 'input window, operand 1, single buffered']
    #allocation10 [shape = 's32[1]{0}', space=sflag, size = 0x4, scoped, tag = 'scoped memory for tpu_custom_call.1']
    #allocation11 [shape = 'u8[512]{0}', space=smem, size = 0x200, scoped, tag = 'output window, operand 0, single buffered']
    %7 = vsyncpa [#allocation7], 0
    %8 = vsyncpa [#allocation10], 0
    %9 = vsyncpa [#allocation8], 0
    // Predicated region
    $region2: #{tpu_custom_call.1} parent=1 // pred_check
      _
    $region3: #{tpu_custom_call.1} parent=1 // pred_check_branch
      %11 = sbr.rel (0) target = $region5
    $region4: #{tpu_custom_call.1} parent=1 // pred_region
      %s13 = ssub.s32 256, 256
      %14 = vsyncadd [#allocation7], %s13
      %s15 = sshll.u32 [#allocation6], 4
      %s16 = int_to_ptr.vmem [resolvable:$true] %s15
      %21 = dma.hbm_to_vmem [thread:$0]  %s0, 256, %s16, [#allocation7], 128, 128, 8
    $region5: #{tpu_custom_call.1} parent=1 // pred_fallthru
      _
    // Predicated region
    $region6: #{tpu_custom_call.1} parent=1 // pred_check
      _
    $region7: #{tpu_custom_call.1} parent=1 // pred_check_branch
      %23 = sbr.rel (0) target = $region9
    $region8: #{tpu_custom_call.1} parent=1 // pred_region
      %s25 = ssub.s32 256, 256
      %26 = vsyncadd [#allocation10], %s25
      %s27 = sshll.u32 [#allocation9], 4
      %s28 = int_to_ptr.vmem [resolvable:$true] %s27
      %33 = dma.hbm_to_vmem [thread:$0]  %s1, 256, %s28, [#allocation10], 128, 128, 8
    $region9: #{tpu_custom_call.1} parent=1 // pred_fallthru
      _
    // Predicated region
    $region10: #{tpu_custom_call.1} parent=1 // pred_check
      _
    $region11: #{tpu_custom_call.1} parent=1 // pred_check_branch
      %35 = sbr.rel (0) target = $region13
    $region12: #{tpu_custom_call.1} parent=1 // pred_region
      %36 = dma.done [#allocation7], 256
    $region13: #{tpu_custom_call.1} parent=1 // pred_fallthru
      _
    // Predicated region
    $region14: #{tpu_custom_call.1} parent=1 // pred_check
      _
    $region15: #{tpu_custom_call.1} parent=1 // pred_check_branch
      %38 = sbr.rel (0) target = $region17
    $region16: #{tpu_custom_call.1} parent=1 // pred_region
      %39 = dma.done [#allocation10], 256
    $region17: #{tpu_custom_call.1} parent=1 // pred_fallthru
      _
    %p40 = scmp.eq.s32.totalorder 0, 0
    // Predicated region
    $region18: #{tpu_custom_call.1} parent=1 // pred_check
      %p41 = pneg %p40
    $region19: #{tpu_custom_call.1} parent=1 // pred_check_branch
      %43 = sbr.rel (%p41) target = $region21
    $region20: #{tpu_custom_call.1} parent=1 // pred_region
      %44 = vst [vmem:[#allocation2] sm:$0xff] 0.0
      %45 = vst [vmem:[#allocation2 + $0x8] sm:$0xff] 0.0
      %46 = vst [vmem:[#allocation3] sm:$0xff] 0.0
      %47 = vst [vmem:[#allocation3 + $0x8] sm:$0xff] 0.0
      %48 = vst [vmem:[#allocation4] sm:$0xff] 0.0
      %49 = vst [vmem:[#allocation4 + $0x8] sm:$0xff] 0.0
      %50 = vst [vmem:[#allocation5] sm:$0xff] 0.0
      %51 = vst [vmem:[#allocation5 + $0x8] sm:$0xff] 0.0
    $region21: #{tpu_custom_call.1} parent=1 // pred_fallthru
      _
    %v52 = vld [vmem:[#allocation6] sm:$0xff]
    %v53 = vld [vmem:[#allocation6 + $0x8] sm:$0xff]
    %v54 = vld [vmem:[#allocation9] sm:$0xff]
    %v55 = vld [vmem:[#allocation9 + $0x8] sm:$0xff]
    %vm56 = vcmp.eq.f32.partialorder %v54, 1.0
    %vm57 = vcmp.eq.f32.partialorder %v55, 1.0
    %v58 = vsel %vm56, 1, 0
    %v59 = vsel %vm57, 1, 0
    %v60 = vcvt.s32.f32 %v58
    %v61 = vcvt.s32.f32 %v59
    %vm62 = vcmp.eq.f32.partialorder %v54, 0.0
    %vm63 = vcmp.eq.f32.partialorder %v55, 0.0
    %v64 = vsel %vm62, 1, 0
    %v65 = vsel %vm63, 1, 0
    %v66 = vcvt.s32.f32 %v64
    %v67 = vcvt.s32.f32 %v65
    %v68 = vmax.f32 %v52, 0.0
    %v69 = vmax.f32 %v53, 0.0
    %v70 = vmul.f32 %v52, %v54
    %v71 = vmul.f32 %v53, %v55
    %v72 = vsub.f32 %v68, %v70
    %v73 = vsub.f32 %v69, %v71
    %v74 = vand.u32 2147483647, %v52
    %v75 = vand.u32 2147483647, %v53
    %v76 = vsub.f32 0.0, %v74
    %v77 = vsub.f32 0.0, %v75
    %v78 = vmul.f32 %v76, 1.442695
    %v79 = vpow.pop %v78
    %v80 = vmul.f32 %v77, 1.442695
    %v81 = vpow.pop %v80
    %v82 = vadd.f32 %v79, 1.0
    %v83 = vlog2.pop %v82
    %v84 = vmul.f32 %v83, 0.6931472
    %v85 = vmul.f32 -0.5, %v79
    %v86 = vadd.f32 %v85, 1.0
    %v87 = vmul.f32 %v86, %v79
    %v88 = vand.u32 2147483647, %v79
    %vm89 = vcmp.lt.f32.partialorder %v88, 0.0004427343
    %v90 = vsel %vm89, %v87, %v84
    %v91 = vadd.f32 %v81, 1.0
    %v92 = vlog2.pop %v91
    %v93 = vmul.f32 %v92, 0.6931472
    %v94 = vmul.f32 -0.5, %v81
    %v95 = vadd.f32 %v94, 1.0
    %v96 = vmul.f32 %v95, %v81
    %v97 = vand.u32 2147483647, %v81
    %vm98 = vcmp.lt.f32.partialorder %v97, 0.0004427343
    %v99 = vsel %vm98, %v96, %v93
    %v100 = vadd.f32 %v72, %v90
    %v101 = vadd.f32 %v73, %v99
    %v102 = vld [vmem:[#allocation2] sm:$0xff]
    %v103 = vld [vmem:[#allocation2 + $0x8] sm:$0xff]
    %v104 = vmul.f32 %v60, %v100
    %v105 = vmul.f32 %v61, %v101
    %v106 = vadd.f32 %v102, %v104
    %v107 = vadd.f32 %v103, %v105
    %108 = vst [vmem:[#allocation2] sm:$0xff] %v106
    %109 = vst [vmem:[#allocation2 + $0x8] sm:$0xff] %v107
    %v110 = vld [vmem:[#allocation3] sm:$0xff]
    %v111 = vld [vmem:[#allocation3 + $0x8] sm:$0xff]
    %v112 = vmul.f32 %v66, %v100
    %v113 = vmul.f32 %v67, %v101
    %v114 = vadd.f32 %v110, %v112
    %v115 = vadd.f32 %v111, %v113
    %116 = vst [vmem:[#allocation3] sm:$0xff] %v114
    %117 = vst [vmem:[#allocation3 + $0x8] sm:$0xff] %v115
    %v118 = vld [vmem:[#allocation4] sm:$0xff]
    %v119 = vld [vmem:[#allocation4 + $0x8] sm:$0xff]
    %v120 = vadd.f32 %v118, %v60
    %v121 = vadd.f32 %v119, %v61
    %122 = vst [vmem:[#allocation4] sm:$0xff] %v120
    %123 = vst [vmem:[#allocation4 + $0x8] sm:$0xff] %v121
    %v124 = vld [vmem:[#allocation5] sm:$0xff]
    %v125 = vld [vmem:[#allocation5 + $0x8] sm:$0xff]
    %v126 = vadd.f32 %v124, %v66
    %v127 = vadd.f32 %v125, %v67
    %128 = vst [vmem:[#allocation5] sm:$0xff] %v126
    %129 = vst [vmem:[#allocation5 + $0x8] sm:$0xff] %v127
    // Predicated region
    $region22: #{tpu_custom_call.1} parent=1 // pred_check
      %p130 = pneg %p40
    $region23: #{tpu_custom_call.1} parent=1 // pred_check_branch
      %132 = sbr.rel (%p130) target = $region25
    $region24: #{tpu_custom_call.1} parent=1 // pred_region
      %v133 = vld [vmem:[#allocation2] sm:$0xff]
      %v134 = vld [vmem:[#allocation2 + $0x8] sm:$0xff]
      %v135 = vadd.f32 %v133, %v134
      %136 = vadd.xlane.f32.xlu0 %v135
      %v137 = vpop.xlane.xlu0 %136
      %v138 = vrot.slane %v137, 4
      %v139 = vadd.f32 %v137, %v138
      %v140 = vrot.slane %v139, 2
      %v141 = vadd.f32 %v139, %v140
      %v142 = vrot.slane %v141, 1
      %v143 = vadd.f32 %v141, %v142
      %s144 = vtos %v143
      %v145 = vld [vmem:[#allocation3] sm:$0xff]
      %v146 = vld [vmem:[#allocation3 + $0x8] sm:$0xff]
      %v147 = vadd.f32 %v145, %v146
      %148 = vadd.xlane.f32.xlu0 %v147
      %v149 = vpop.xlane.xlu0 %148
      %v150 = vrot.slane %v149, 4
      %v151 = vadd.f32 %v149, %v150
      %v152 = vrot.slane %v151, 2
      %v153 = vadd.f32 %v151, %v152
      %v154 = vrot.slane %v153, 1
      %v155 = vadd.f32 %v153, %v154
      %s156 = vtos %v155
      %v157 = vld [vmem:[#allocation4] sm:$0xff]
      %v158 = vld [vmem:[#allocation4 + $0x8] sm:$0xff]
      %v159 = vadd.f32 %v157, %v158
      %160 = vadd.xlane.f32.xlu0 %v159
      %v161 = vpop.xlane.xlu0 %160
      %v162 = vrot.slane %v161, 4
      %v163 = vadd.f32 %v161, %v162
      %v164 = vrot.slane %v163, 2
      %v165 = vadd.f32 %v163, %v164
      %v166 = vrot.slane %v165, 1
      %v167 = vadd.f32 %v165, %v166
      %s168 = vtos %v167
      %v169 = vld [vmem:[#allocation5] sm:$0xff]
      %v170 = vld [vmem:[#allocation5 + $0x8] sm:$0xff]
      %v171 = vadd.f32 %v169, %v170
      %172 = vadd.xlane.f32.xlu0 %v171
      %v173 = vpop.xlane.xlu0 %172
      %v174 = vrot.slane %v173, 4
      %v175 = vadd.f32 %v173, %v174
      %v176 = vrot.slane %v175, 2
      %v177 = vadd.f32 %v175, %v176
      %v178 = vrot.slane %v177, 1
      %v179 = vadd.f32 %v177, %v178
      %s180 = vtos %v179
      %v181 = vstv %s168
      %v182 = vrcp.pop %v181
      %s183 = vtos %v182
      %s184 = smul.f32 %s144, %s183
      %v185 = vstv %s180
      %v186 = vrcp.pop %v185
      %s187 = vtos %v186
      %s188 = smul.f32 %s156, %s187
      %s189 = sadd.f32 %s184, %s188
      %s190 = smul.f32 %s189, 0.5
      %s191 = scalar_lea.smem [#allocation11], 0
      %192 = sst [smem:[%s191]] %s190
    $region25: #{tpu_custom_call.1} parent=1 // pred_fallthru
      _
    // Predicated region
    $region26: #{tpu_custom_call.1} parent=1 // pred_check
      _
    $region27: #{tpu_custom_call.1} parent=1 // pred_check_branch
      %194 = sbr.rel (0) target = $region29
    $region28: #{tpu_custom_call.1} parent=1 // pred_region
      %s196 = ssub.s32 16, 16
      %197 = vsyncadd [#allocation8], %s196
      %200 = dma.smem_to_hbm [#allocation11], 16, %s2, [#allocation8]
    $region29: #{tpu_custom_call.1} parent=1 // pred_fallthru
      _
    // Predicated region
    $region30: #{tpu_custom_call.1} parent=1 // pred_check
      _
    $region31: #{tpu_custom_call.1} parent=1 // pred_check_branch
      %202 = sbr.rel (0) target = $region33
    $region32: #{tpu_custom_call.1} parent=1 // pred_region
      %203 = dma.done [#allocation8], 16
    $region33: #{tpu_custom_call.1} parent=1 // pred_fallthru
      _
    %204 = sfence
    %205 = vsyncpa [#allocation7], 1
    %206 = vsyncpa [#allocation10], 1
    %207 = vsyncpa [#allocation8], 1

</llo_original>
